<compile_context>
chip_gen: v7x
topology: tpu7x:2x2x1
jax: 0.10.0
libtpu: 0.0.40
codegen_flags: <defaults>
</compile_context>

<pallas_src>
import jax
import jax.numpy as jnp
from jax.experimental import pallas as pl
from jax.experimental.pallas import tpu as pltpu

_LANE = 128
# Minimum sublane tiling per element width (bytes): f32 -> 8, bf16 -> 16, int8/fp8 -> 32
_MIN_SUBLANE = {4: 8, 2: 16, 1: 32}
_BLOCK_BYTES = 2 * 1024 * 1024  # ~2 MiB blocks: safe on v5e/v6e/v7x defaults


def _relu_kernel(x_ref, o_ref):
    # Mem-bound elementwise: single VPU max, no materialized zero tile.
    o_ref[...] = jnp.maximum(x_ref[...], 0)


def _relu_2d(x2d, tm):
    """Run the ReLU kernel over a (rows, width) slab with row-tile `tm`."""
    rows, width = x2d.shape
    grid = (pl.cdiv(rows, tm),)  # boundary block (if any) is masked by Pallas
    return pl.pallas_call(
        _relu_kernel,
        out_shape=jax.ShapeDtypeStruct((rows, width), x2d.dtype),
        grid_spec=pltpu.PrefetchScalarGridSpec(
            num_scalar_prefetch=0,
            grid=grid,
            in_specs=[pl.BlockSpec((tm, width), lambda i: (i, 0))],
            out_specs=pl.BlockSpec((tm, width), lambda i: (i, 0)),
        ),
        compiler_params=pltpu.CompilerParams(
            # parallel axis: shards across the 2 TensorCores on v7x,
            # no-op on single-TC v5e/v6e.
            dimension_semantics=("parallel",)),
    )(x2d)


def _pick_layout(n, itemsize):
    """Choose (width, rows, tm) for a lane-dense slab; None if 128 doesn't divide n."""
    min_sub = _MIN_SUBLANE.get(itemsize, 8)

    width = None
    for w in (8192, 4096, 2048, 1024, 512, 256, 128):
        if n % w == 0:
            width = w
            break
    if width is None:
        return None

    rows = n // width
    target_rows = (_BLOCK_BYTES // itemsize) // width
    target_rows = max(min_sub, (target_rows // min_sub) * min_sub)

    if rows <= target_rows:
        tm = rows              # single full-extent block (always legal)
    else:
        tm = target_rows       # multiple of the dtype sublane minimum; grid >= 2 steps
    return width, rows, tm


def relu_forward(x):
    """ReLU forward matching torch `input.clamp(min=0)` semantics."""
    orig_shape = x.shape
    n = x.size
    if n == 0:
        return x

    itemsize = jnp.dtype(x.dtype).itemsize
    layout = _pick_layout(n, itemsize)

    if layout is not None:
        width, rows, tm = layout
        # Free contiguous reshape: no pad / slice / extra HBM pass.
        y2d = _relu_2d(x.reshape(rows, width), tm)
        return y2d.reshape(orig_shape)

    # Rare ragged fallback (element count not a multiple of 128): pad the flat
    # vector (zero padding is ReLU-invariant) and slice back afterwards.
    pad_to = 8 * _LANE
    n_pad = (-n) % pad_to
    x_flat = jnp.pad(x.reshape(-1), (0, n_pad))
    width, rows, tm = _pick_layout(n + n_pad, itemsize)
    y2d = _relu_2d(x_flat.reshape(rows, width), tm)
    return y2d.reshape(-1)[:n].reshape(orig_shape)


class ReLU:
    """JAX/Pallas counterpart of the PyTorch ReLU module (forward only)."""

    def __init__(self, packbits=True):
        # packbits only changes what is saved for backward; forward is identical.
        self.packbits = packbits

    def __call__(self, x):
        return relu_forward(x)


if __name__ == "__main__":
    key = jax.random.PRNGKey(0)
    x = jax.random.normal(key, (2, 4, 16, 16), dtype=jnp.float32)  # NCHW

    mod = ReLU(packbits=True)
    y = mod(x)
    jax.block_until_ready(y)

    # sanity check against plain JAX reference
    ref = jnp.maximum(x, 0.0)
    assert y.shape == x.shape and y.dtype == x.dtype
    assert jnp.allclose(y, ref), "mismatch vs reference ReLU"

    # extra check: ragged size exercises the fallback path
    x2 = jax.random.normal(jax.random.PRNGKey(1), (3, 5, 7), dtype=jnp.float32)
    y2 = mod(x2)
    jax.block_until_ready(y2)
    assert jnp.allclose(y2, jnp.maximum(x2, 0.0)), "mismatch on ragged shape"

    print("KERNEL_OK")
</pallas_src>

<mosaic_0001>
module attributes {stable_mosaic.version = 11 : i64} {
  func.func @_relu_kernel(%arg0: i32, %arg1: memref<1x2048xf32, #tpu.memory_space<vmem>>, %arg2: memref<1x2048xf32, #tpu.memory_space<vmem>>) attributes {dimension_semantics = [#tpu.dimension_semantics<parallel>], iteration_bounds = array<i64: 1>, scalar_prefetch = 0 : i64, scratch_operands = 0 : i64, tpu.core_type = #tpu.core_type<tc>, window_params = [{transform_indices = @transform_0, window_bounds = array<i64: 1, 2048>}, {transform_indices = @transform_1, window_bounds = array<i64: 1, 2048>}]} {
    %c0 = arith.constant 0 : index
    %c0_0 = arith.constant 0 : index
    %0 = vector.load %arg1[%c0, %c0_0] : memref<1x2048xf32, #tpu.memory_space<vmem>>, vector<1x2048xf32>
    %cst = arith.constant 0.000000e+00 : f32
    %1 = vector.broadcast %cst : f32 to vector<1x2048xf32>
    %2 = arith.maximumf %0, %1 : vector<1x2048xf32>
    %c0_1 = arith.constant 0 : index
    %c0_2 = arith.constant 0 : index
    %3 = vector.load %arg2[%c0_1, %c0_2] : memref<1x2048xf32, #tpu.memory_space<vmem>>, vector<1x2048xf32>
    tpu.vector_store %arg2[%c0_1, %c0_2], %2 {strides = array<i32>} : memref<1x2048xf32, #tpu.memory_space<vmem>>, vector<1x2048xf32>,
    return
  }
  func.func @transform_0(%arg0: i32) -> (i32, i32) {
    %c0_i32 = arith.constant 0 : i32
    %c0_i32_0 = arith.constant 0 : i32
    return %arg0, %c0_i32 : i32, i32
  }
  func.func @transform_1(%arg0: i32) -> (i32, i32) {
    %c0_i32 = arith.constant 0 : i32
    %c0_i32_0 = arith.constant 0 : i32
    return %arg0, %c0_i32 : i32, i32
  }
}

</mosaic_0001>

<llo_original>
// kernel: tpu_custom_call.1
$region0: #{tpu_custom_call.1}
  #allocation0 [shape = 'u32[]', space=smem, size = 0x4, offset = 0x4, fixed_abs, tag = 'smem constant byte address 0x4 - core index']
  #allocation1 [shape = 'u32[144,128]{1,0:T(1,128)}', space=vmem, size = 0x12000, scoped, tag = 'internal scratch']
  %s0 = inlined_call_operand.hbm [shape: f32[1,2048], index: 0, kind: input, shape index: {}]
  %s1 = inlined_call_operand.hbm [shape: f32[1,2048], index: 1, kind: output, shape index: {}]
  %s2 = sld [smem:[#allocation0]]
  $region18: #{tpu_custom_call.1} parent=0
    _
  %s4 = ssub.s32 1, %s2
  %s5 = scalar_select 0, %s4, %s2
  $region1: #{tpu_custom_call.1} parent=0
    #allocation2 [shape = 'u8[8192]{0}', space=vmem, size = 0x2000, scoped, tag = 'input window, operand 0, single buffered']
    #allocation3 [shape = 's32[1]{0}', space=sflag, size = 0x4, scoped, tag = 'scoped memory for tpu_custom_call.1']
    #allocation4 [shape = 's32[1]{0}', space=sflag, size = 0x4, scoped, tag = 'scoped memory for tpu_custom_call.1']
    #allocation5 [shape = 'u8[8192]{0}', space=vmem, size = 0x2000, scoped, tag = 'output window, operand 0, single buffered']
    %6 = vsyncpa [#allocation3], 0
    %7 = vsyncpa [#allocation4], 0
    // Predicated region
    $region2: #{tpu_custom_call.1} parent=1 // pred_check
      _
    $region3: #{tpu_custom_call.1} parent=1 // pred_check_branch
      %9 = sbr.rel (0) target = $region5
    $region4: #{tpu_custom_call.1} parent=1 // pred_region
      %s11 = ssub.s32 256, 256
      %12 = vsyncadd [#allocation3], %s11
      %s14 = sshll.u32 [#allocation2], 4
      %s15 = int_to_ptr.vmem [resolvable:$true] %s14
      %17 = dma.hbm_to_vmem [thread:$0]  %s0, 256, %s15, [#allocation3]
    $region5: #{tpu_custom_call.1} parent=1 // pred_fallthru
      _
    // Predicated region
    $region6: #{tpu_custom_call.1} parent=1 // pred_check
      _
    $region7: #{tpu_custom_call.1} parent=1 // pred_check_branch
      %19 = sbr.rel (0) target = $region9
    $region8: #{tpu_custom_call.1} parent=1 // pred_region
      %20 = dma.done [#allocation3], 256
    $region9: #{tpu_custom_call.1} parent=1 // pred_fallthru
      _
    %v21 = vld [vmem:[#allocation2] sm:$0xff]
    %v22 = vld [vmem:[#allocation2 + $0x8] sm:$0xff]
    %v23 = vmax.f32 %v21, 0.0
    %v24 = vmax.f32 %v22, 0.0
    %25 = vst [vmem:[#allocation5] sm:$0xff] %v23
    %26 = vst [vmem:[#allocation5 + $0x8] sm:$0xff] %v24
    // Predicated region
    $region10: #{tpu_custom_call.1} parent=1 // pred_check
      _
    $region11: #{tpu_custom_call.1} parent=1 // pred_check_branch
      %28 = sbr.rel (0) target = $region13
    $region12: #{tpu_custom_call.1} parent=1 // pred_region
      %s30 = ssub.s32 256, 256
      %31 = vsyncadd [#allocation4], %s30
      %s33 = sshll.u32 [#allocation5], 4
      %s34 = int_to_ptr.vmem [resolvable:$true] %s33
      %36 = dma.vmem_to_hbm [thread:$0]  %s34, 256, %s1, [#allocation4]
    $region13: #{tpu_custom_call.1} parent=1 // pred_fallthru
      _
    // Predicated region
    $region14: #{tpu_custom_call.1} parent=1 // pred_check
      _
    $region15: #{tpu_custom_call.1} parent=1 // pred_check_branch
      %38 = sbr.rel (0) target = $region17
    $region16: #{tpu_custom_call.1} parent=1 // pred_region
      %39 = dma.done [#allocation4], 256
    $region17: #{tpu_custom_call.1} parent=1 // pred_fallthru
      _
    %40 = vsyncpa [#allocation3], 1
    %41 = vsyncpa [#allocation4], 1

</llo_original>
